<compile_context>
chip_gen: v5e
topology: v5e:2x2
jax: 0.10.0
libtpu: 0.0.40
codegen_flags: <defaults>
</compile_context>

<pallas_src>
import functools

import jax
import jax.numpy as jnp
import numpy as np
from jax import lax
from jax.experimental import pallas as pl
from jax.experimental.pallas import tpu as pltpu


# --------------------------------------------------------------------------
# Gate (softmax scoring, n_groups == 1, no bias) -- tiny op, kept in JAX.
# Routing weights stay in f32 (no bf16 round trip).
# --------------------------------------------------------------------------
def gate_deepseek_v3(x, gate_w, *, topk, route_scale=1.0, score_func="softmax"):
    scores = jnp.dot(x.astype(jnp.float32), gate_w.astype(jnp.float32).T)
    if score_func == "softmax":
        scores = jax.nn.softmax(scores, axis=-1)
    else:
        scores = jax.nn.sigmoid(scores)
    weights, indices = lax.top_k(scores, topk)
    if score_func == "sigmoid":
        weights = weights / jnp.sum(weights, axis=-1, keepdims=True)
    weights = weights * route_scale
    return weights, indices                      # f32 weights, int32 indices


# --------------------------------------------------------------------------
# Fused MoE kernel.
# Grid = (M tiles [parallel], experts [arbitrary], inter tiles [arbitrary]).
# For each step: packed gate+up matmul, silu*up, scale by per-token routing
# weight, partial down projection accumulated into a f32 VMEM accumulator that
# is resident across the expert and inter axes.
# --------------------------------------------------------------------------
def _moe_kernel(r_ref, x_ref, w13_ref, w2t_ref, o_ref, acc_ref):
    e = pl.program_id(1)
    j = pl.program_id(2)

    @pl.when(jnp.logical_and(e == 0, j == 0))
    def _():
        acc_ref[...] = jnp.zeros_like(acc_ref)

    x = x_ref[...]                                     # (tm, dim) bf16

    # Packed gate+up projection: one MXU matmul, N = 2*tj.
    gu = lax.dot_general(x, w13_ref[...], (((1,), (1,)), ((), ())),
                         preferred_element_type=jnp.float32)
    tj = gu.shape[-1] // 2
    g = gu[:, :tj]
    u = gu[:, tj:]

    h = (g * jax.nn.sigmoid(g)) * u                    # silu(g) * u  (f32)
    h = h * r_ref[...]                                 # routing weight (tm, 1)

    # Partial down projection: (tm, tj) x (tj, dim) -> (tm, dim), bf16 MXU,
    # f32 accumulation.  W2 pre-transposed so this is a canonical MxK.KxN.
    acc_ref[...] += lax.dot_general(h.astype(w2t_ref.dtype), w2t_ref[...],
                                    (((1,), (0,)), ((), ())),
                                    preferred_element_type=jnp.float32)

    @pl.when(jnp.logical_and(e == pl.num_programs(1) - 1,
                             j == pl.num_programs(2) - 1))
    def _():
        o_ref[...] = acc_ref[...].astype(o_ref.dtype)


# --------------------------------------------------------------------------
# Tiling / VMEM-limit helpers
# --------------------------------------------------------------------------
def _vmem_capacity_bytes():
    try:
        return int(pltpu.get_tpu_info().vmem_capacity_bytes)
    except Exception:
        return None


def _choose_tiles(M, inter, vmem_cap=None):
    # inter tile; packed gate+up keeps MXU N >= 256 even for tj = 128.
    if inter % 256 == 0:
        tj = 256
    elif inter % 128 == 0:
        tj = 128
    else:
        tj = inter
    # token tile; bf16 packs 16 sublanes per vreg -> multiple of 16.
    if M >= 256:
        tm = 256
        # v5e/v6e (128 MiB VMEM): bigger M tile halves weight re-streaming.
        if M >= 512 and vmem_cap is not None and vmem_cap >= (100 << 20):
            tm = 512
    else:
        tm = max(16, -(-M // 16) * 16)
    return tm, tj


def _vmem_limit_bytes(tm, tj, dim, weight_itemsize, cap=None):
    # double-buffered x, packed w1w3 tile, w2t tile, out tile
    dbl = 2 * ((tm * dim) + (2 * tj * dim) + (tj * dim) + (tm * dim)) * weight_itemsize
    acc = tm * dim * 4                      # f32 accumulator scratch
    route = 2 * tm * 128 * 4                # routing block (lane-padded), x2
    limit = int((dbl + acc + route) * 1.25) + (4 << 20)
    limit = max(limit, 32 << 20)
    limit = min(limit, 100 << 20)
    if cap:
        limit = min(limit, int(cap * 0.9))
    return limit


# --------------------------------------------------------------------------
# Full MoE forward (routed + shared experts) -- single pallas_call.
# --------------------------------------------------------------------------
@functools.partial(
    jax.jit,
    static_argnames=("n_routed", "n_shared", "topk", "route_scale", "tm", "tj"))
def _moe_impl(x, gate_w, w1w3, w2, *, n_routed, n_shared, topk, route_scale,
              tm, tj):
    shape = x.shape
    dim = shape[-1]
    xf = x.reshape(-1, dim)
    M = xf.shape[0]
    E = n_routed + n_shared
    inter = w1w3.shape[1] // 2
    n_j = inter // tj

    # ---- gate + dense per-token/per-expert routing matrix (built once) ----
    weights, indices = gate_deepseek_v3(xf, gate_w, topk=topk,
                                        route_scale=route_scale)
    r = jnp.zeros((M, E), jnp.float32)
    r = r.at[jnp.arange(M)[:, None], indices].add(weights)
    if n_shared:
        r = r.at[:, n_routed:].set(1.0)          # shared experts: weight 1

    # ---- pad tokens to a multiple of tm (padded rows have weight 0) ----
    M_pad = -(-M // tm) * tm
    if M_pad != M:
        xf = jnp.pad(xf, ((0, M_pad - M), (0, 0)))
        r = jnp.pad(r, ((0, M_pad - M), (0, 0)))
    r3 = jnp.transpose(r)[:, :, None]            # (E, M_pad, 1) f32

    # ---- weight repack (layout only; in production do once at load) ----
    # gate/up rows of each inter tile made adjacent -> single (2*tj, dim) DMA.
    w1 = w1w3[:, :inter].reshape(E, n_j, tj, dim)
    w3 = w1w3[:, inter:].reshape(E, n_j, tj, dim)
    w13 = jnp.concatenate([w1, w3], axis=2)              # (E, n_j, 2*tj, dim)
    # W2 transposed to (inter, dim): contiguous rows, canonical MXU layout.
    w2t = jnp.transpose(w2, (0, 2, 1)).reshape(E, n_j, tj, dim)

    n_i = M_pad // tm
    wsz = w1w3.dtype.itemsize
    cost = pl.CostEstimate(
        flops=int(6 * M_pad * dim * inter * E),
        transcendentals=int(M_pad * inter * E),
        bytes_accessed=int(2 * M_pad * dim * x.dtype.itemsize      # x + out
                           + E * M_pad * 4                          # routing
                           + n_i * E * 3 * inter * dim * wsz),      # weights
    )

    vmem_limit = _vmem_limit_bytes(tm, tj, dim, wsz, cap=_vmem_capacity_bytes())

    out = pl.pallas_call(
        _moe_kernel,
        out_shape=jax.ShapeDtypeStruct((M_pad, dim), x.dtype),
        grid_spec=pltpu.PrefetchScalarGridSpec(
            num_scalar_prefetch=0,
            grid=(n_i, E, n_j),
            in_specs=[
                # per-token routing weight column for expert e
                pl.BlockSpec((None, tm, 1), lambda i, e, j: (e, i, 0)),
                # token tile (constant across e, j -> fetched once per i)
                pl.BlockSpec((tm, dim), lambda i, e, j: (i, 0)),
                # packed gate+up weight tile
                pl.BlockSpec((None, None, 2 * tj, dim),
                             lambda i, e, j: (e, j, 0, 0)),
                # transposed down-projection weight tile
                pl.BlockSpec((None, None, tj, dim),
                             lambda i, e, j: (e, j, 0, 0)),
            ],
            out_specs=pl.BlockSpec((tm, dim), lambda i, e, j: (i, 0)),
            scratch_shapes=[pltpu.VMEM((tm, dim), jnp.float32)],
        ),
        compiler_params=pltpu.CompilerParams(
            dimension_semantics=("parallel", "arbitrary", "arbitrary"),
            vmem_limit_bytes=vmem_limit,
        ),
        cost_estimate=cost,
    )(r3, xf, w13, w2t)

    if M_pad != M:
        out = out[:M]
    return out.reshape(shape)


def moe_deepseek_v3_forward(x, gate_w, w1w3, w2, *, n_routed, n_shared, topk,
                            route_scale=1.0):
    """MoE forward.

    x:      [..., dim]              bf16 activations
    gate_w: [n_routed, dim]         gate weight
    w1w3:   [n_routed+n_shared, 2*inter, dim]  merged gate/up weights
                                    (routed experts first, then shared)
    w2:     [n_routed+n_shared, dim, inter]    down-projection weights
    """
    M = 1
    for s in x.shape[:-1]:
        M *= int(s)
    inter = w1w3.shape[1] // 2
    tm, tj = _choose_tiles(M, inter, _vmem_capacity_bytes())
    return _moe_impl(x, gate_w, w1w3, w2, n_routed=int(n_routed),
                     n_shared=int(n_shared), topk=int(topk),
                     route_scale=float(route_scale), tm=tm, tj=tj)


# --------------------------------------------------------------------------
# Pure-JAX f32 reference
# --------------------------------------------------------------------------
def _moe_ref(x, gate_w, w1w3, w2, *, n_routed, n_shared, topk, route_scale=1.0):
    shape = x.shape
    dim = shape[-1]
    xf = x.reshape(-1, dim)
    xf32 = xf.astype(jnp.float32)
    inter = w1w3.shape[1] // 2
    weights, indices = gate_deepseek_v3(xf, gate_w, topk=topk,
                                        route_scale=route_scale)
    y = jnp.zeros_like(xf32)
    for e in range(n_routed + n_shared):
        w1 = w1w3[e, :inter].astype(jnp.float32)
        w3 = w1w3[e, inter:].astype(jnp.float32)
        w2e = w2[e].astype(jnp.float32)
        out = (jax.nn.silu(xf32 @ w1.T) * (xf32 @ w3.T)) @ w2e.T
        if e < n_routed:
            w_e = jnp.sum(jnp.where(indices == e, weights, 0.0), axis=-1)
            out = out * w_e[:, None]
        y = y + out
    return y.astype(x.dtype).reshape(shape)


if __name__ == "__main__":
    # Small config consistent with the module: batch=2, seq=8 (16 tokens),
    # dim=128, moe_inter_dim=256, 8 routed experts, top-2, 1 shared expert,
    # softmax gate, n_groups=1, route_scale=1.0, bf16 weights.
    batch, seq, dim, inter = 2, 8, 128, 256
    n_routed, n_shared, topk = 8, 1, 2
    E = n_routed + n_shared

    key = jax.random.PRNGKey(0)
    kx, kg, k13, k2, kodd = jax.random.split(key, 5)

    x = jax.random.normal(kx, (batch, seq, dim), jnp.float32).astype(jnp.bfloat16)
    gate_w = (0.1 * jax.random.normal(kg, (n_routed, dim), jnp.float32)
              ).astype(jnp.bfloat16)
    w1w3 = (0.05 * jax.random.normal(k13, (E, 2 * inter, dim), jnp.float32)
            ).astype(jnp.bfloat16)
    w2 = (0.05 * jax.random.normal(k2, (E, dim, inter), jnp.float32)
          ).astype(jnp.bfloat16)

    # Full MoE forward via the fused Pallas kernel.
    out = moe_deepseek_v3_forward(x, gate_w, w1w3, w2, n_routed=n_routed,
                                  n_shared=n_shared, topk=topk, route_scale=1.0)
    out = jax.block_until_ready(out)

    ref = _moe_ref(x, gate_w, w1w3, w2, n_routed=n_routed, n_shared=n_shared,
                   topk=topk, route_scale=1.0)
    np.testing.assert_allclose(np.asarray(out, dtype=np.float32),
                               np.asarray(ref, dtype=np.float32),
                               atol=1e-1, rtol=5e-2)

    # Extra check: odd token count (exercises the padding / tm=16 path).
    x_odd = jax.random.normal(kodd, (1, 13, dim), jnp.float32).astype(jnp.bfloat16)
    out_odd = jax.block_until_ready(
        moe_deepseek_v3_forward(x_odd, gate_w, w1w3, w2, n_routed=n_routed,
                                n_shared=n_shared, topk=topk, route_scale=1.0))
    ref_odd = _moe_ref(x_odd, gate_w, w1w3, w2, n_routed=n_routed,
                       n_shared=n_shared, topk=topk, route_scale=1.0)
    np.testing.assert_allclose(np.asarray(out_odd, dtype=np.float32),
                               np.asarray(ref_odd, dtype=np.float32),
                               atol=1e-1, rtol=5e-2)

    print("KERNEL_OK")
</pallas_src>

<mosaic_0001>
module attributes {stable_mosaic.version = 11 : i64} {
  func.func @_moe_kernel(%arg0: i32, %arg1: i32, %arg2: i32, %arg3: memref<1x16x1xf32, #tpu.memory_space<vmem>>, %arg4: memref<16x128xbf16, #tpu.memory_space<vmem>>, %arg5: memref<1x1x512x128xbf16, #tpu.memory_space<vmem>>, %arg6: memref<1x1x256x128xbf16, #tpu.memory_space<vmem>>, %arg7: memref<16x128xbf16, #tpu.memory_space<vmem>>, %arg8: memref<16x128xf32, #tpu.memory_space<vmem>>) attributes {dimension_semantics = [#tpu.dimension_semantics<parallel>, #tpu.dimension_semantics<arbitrary>, #tpu.dimension_semantics<arbitrary>], iteration_bounds = array<i64: 1, 9, 1>, scalar_prefetch = 0 : i64, scratch_operands = 1 : i64, tpu.core_type = #tpu.core_type<tc>, window_params = [{transform_indices = @transform_0, window_bounds = array<i64: 1, 16, 1>}, {transform_indices = @transform_1, window_bounds = array<i64: 16, 128>}, {transform_indices = @transform_2, window_bounds = array<i64: 1, 1, 512, 128>}, {transform_indices = @transform_3, window_bounds = array<i64: 1, 1, 256, 128>}, {transform_indices = @transform_4, window_bounds = array<i64: 16, 128>}]} {
    %c0_i32 = arith.constant 0 : i32
    %0 = arith.cmpi eq, %arg1, %c0_i32 : i32
    %c0_i32_0 = arith.constant 0 : i32
    %1 = arith.cmpi eq, %arg2, %c0_i32_0 : i32
    %2 = arith.andi %0, %1 : i1
    %3 = arith.extui %2 : i1 to i32
    %c0_i32_1 = arith.constant 0 : i32
    %4 = arith.cmpi ne, %3, %c0_i32_1 : i32
    scf.if %4 {
      %cst_22 = arith.constant 0.000000e+00 : f32
      %34 = vector.broadcast %cst_22 : f32 to vector<16x128xf32>
      %c0_23 = arith.constant 0 : index
      %c0_24 = arith.constant 0 : index
      %35 = vector.load %arg8[%c0_23, %c0_24] : memref<16x128xf32, #tpu.memory_space<vmem>>, vector<16x128xf32>
      tpu.vector_store %arg8[%c0_23, %c0_24], %34 {strides = array<i32>} : memref<16x128xf32, #tpu.memory_space<vmem>>, vector<16x128xf32>,
    } else {
    }
    %c0 = arith.constant 0 : index
    %c0_2 = arith.constant 0 : index
    %5 = vector.load %arg4[%c0, %c0_2] : memref<16x128xbf16, #tpu.memory_space<vmem>>, vector<16x128xbf16>
    %c0_3 = arith.constant 0 : index
    %c0_4 = arith.constant 0 : index
    %c0_5 = arith.constant 0 : index
    %c0_6 = arith.constant 0 : index
    %6 = vector.load %arg5[%c0_3, %c0_4, %c0_5, %c0_6] : memref<1x1x512x128xbf16, #tpu.memory_space<vmem>>, vector<1x1x512x128xbf16>
    %7 = vector.shape_cast %6 : vector<1x1x512x128xbf16> to vector<512x128xbf16>
    %cst = arith.constant dense<0.000000e+00> : vector<16x512xf32>
    %8 = tpu.matmul %5, %7, %cst {dimension_numbers = #tpu.dot_dimension_numbers<[1], [1], [0], [0], [0, 0, 1, 0], [], []>} : vector<16x128xbf16>, vector<512x128xbf16>, vector<16x512xf32> -> vector<16x512xf32>
    %9 = vector.extract_strided_slice %8 {offsets = [0, 0], sizes = [16, 256], strides = [1, 1]} : vector<16x512xf32> to vector<16x256xf32>
    %10 = vector.extract_strided_slice %8 {offsets = [0, 256], sizes = [16, 256], strides = [1, 1]} : vector<16x512xf32> to vector<16x256xf32>
    %11 = arith.negf %9 : vector<16x256xf32>
    %12 = math.exp %11 : vector<16x256xf32>
    %cst_7 = arith.constant 1.000000e+00 : f32
    %13 = vector.broadcast %cst_7 : f32 to vector<16x256xf32>
    %14 = arith.addf %13, %12 : vector<16x256xf32>
    %15 = arith.divf %13, %14 : vector<16x256xf32>
    %16 = arith.mulf %9, %15 : vector<16x256xf32>
    %17 = arith.mulf %16, %10 : vector<16x256xf32>
    %c0_8 = arith.constant 0 : index
    %c0_9 = arith.constant 0 : index
    %c0_10 = arith.constant 0 : index
    %18 = vector.load %arg3[%c0_8, %c0_9, %c0_10] : memref<1x16x1xf32, #tpu.memory_space<vmem>>, vector<1x16x1xf32>
    %19 = vector.shape_cast %18 : vector<1x16x1xf32> to vector<16x1xf32>
    %20 = vector.broadcast %19 : vector<16x1xf32> to vector<16x256xf32>
    %21 = arith.mulf %17, %20 : vector<16x256xf32>
    %c0_11 = arith.constant 0 : index
    %c0_12 = arith.constant 0 : index
    %22 = vector.load %arg8[%c0_11, %c0_12] : memref<16x128xf32, #tpu.memory_space<vmem>>, vector<16x128xf32>
    %23 = arith.truncf %21 : vector<16x256xf32> to vector<16x256xbf16>
    %c0_13 = arith.constant 0 : index
    %c0_14 = arith.constant 0 : index
    %c0_15 = arith.constant 0 : index
    %c0_16 = arith.constant 0 : index
    %24 = vector.load %arg6[%c0_13, %c0_14, %c0_15, %c0_16] : memref<1x1x256x128xbf16, #tpu.memory_space<vmem>>, vector<1x1x256x128xbf16>
    %25 = vector.shape_cast %24 : vector<1x1x256x128xbf16> to vector<256x128xbf16>
    %cst_17 = arith.constant dense<0.000000e+00> : vector<16x128xf32>
    %26 = tpu.matmul %23, %25, %cst_17 {dimension_numbers = #tpu.dot_dimension_numbers<[1], [0], [0], [1], [0, 0, 1, 1], [], []>} : vector<16x256xbf16>, vector<256x128xbf16>, vector<16x128xf32> -> vector<16x128xf32>
    %27 = arith.addf %22, %26 : vector<16x128xf32>
    %c0_18 = arith.constant 0 : index
    %c0_19 = arith.constant 0 : index
    %28 = vector.load %arg8[%c0_18, %c0_19] : memref<16x128xf32, #tpu.memory_space<vmem>>, vector<16x128xf32>
    tpu.vector_store %arg8[%c0_18, %c0_19], %27 {strides = array<i32>} : memref<16x128xf32, #tpu.memory_space<vmem>>, vector<16x128xf32>,
    %c8_i32 = arith.constant 8 : i32
    %29 = arith.cmpi eq, %arg1, %c8_i32 : i32
    %c0_i32_20 = arith.constant 0 : i32
    %30 = arith.cmpi eq, %arg2, %c0_i32_20 : i32
    %31 = arith.andi %29, %30 : i1
    %32 = arith.extui %31 : i1 to i32
    %c0_i32_21 = arith.constant 0 : i32
    %33 = arith.cmpi ne, %32, %c0_i32_21 : i32
    scf.if %33 {
      %c0_22 = arith.constant 0 : index
      %c0_23 = arith.constant 0 : index
      %34 = vector.load %arg8[%c0_22, %c0_23] : memref<16x128xf32, #tpu.memory_space<vmem>>, vector<16x128xf32>
      %35 = arith.truncf %34 : vector<16x128xf32> to vector<16x128xbf16>
      %c0_24 = arith.constant 0 : index
      %c0_25 = arith.constant 0 : index
      %36 = vector.load %arg7[%c0_24, %c0_25] : memref<16x128xbf16, #tpu.memory_space<vmem>>, vector<16x128xbf16>
      tpu.vector_store %arg7[%c0_24, %c0_25], %35 {strides = array<i32>} : memref<16x128xbf16, #tpu.memory_space<vmem>>, vector<16x128xbf16>,
    } else {
    }
    return
  }
  func.func @transform_0(%arg0: i32, %arg1: i32, %arg2: i32) -> (i32, i32, i32) {
    %c0_i32 = arith.constant 0 : i32
    %c0_i32_0 = arith.constant 0 : i32
    return %arg1, %arg0, %c0_i32 : i32, i32, i32
  }
  func.func @transform_1(%arg0: i32, %arg1: i32, %arg2: i32) -> (i32, i32) {
    %c0_i32 = arith.constant 0 : i32
    %c0_i32_0 = arith.constant 0 : i32
    return %arg0, %c0_i32 : i32, i32
  }
  func.func @transform_2(%arg0: i32, %arg1: i32, %arg2: i32) -> (i32, i32, i32, i32) {
    %c0_i32 = arith.constant 0 : i32
    %c0_i32_0 = arith.constant 0 : i32
    %c0_i32_1 = arith.constant 0 : i32
    return %arg1, %arg2, %c0_i32, %c0_i32_0 : i32, i32, i32, i32
  }
  func.func @transform_3(%arg0: i32, %arg1: i32, %arg2: i32) -> (i32, i32, i32, i32) {
    %c0_i32 = arith.constant 0 : i32
    %c0_i32_0 = arith.constant 0 : i32
    %c0_i32_1 = arith.constant 0 : i32
    return %arg1, %arg2, %c0_i32, %c0_i32_0 : i32, i32, i32, i32
  }
  func.func @transform_4(%arg0: i32, %arg1: i32, %arg2: i32) -> (i32, i32) {
    %c0_i32 = arith.constant 0 : i32
    %c0_i32_0 = arith.constant 0 : i32
    return %arg0, %c0_i32 : i32, i32
  }
}

</mosaic_0001>

<llo_original>
// kernel: _moe_impl.1
$region0: #{_moe_impl.1}
  #allocation0 [shape = 'u32[]', space=smem, size = 0x4, offset = 0x4, fixed_abs, tag = 'smem constant byte address 0x4 - core index']
  #allocation1 [shape = 'u32[72,128]{1,0:T(1,128)}', space=vmem, size = 0x9000, scoped, tag = 'internal scratch']
  #allocation2 [shape = 'f32[16,128]{1,0:T(8,128)}', space=vmem, size = 0x2000, scoped, tag = 'scratch operand']
  %s0 = inlined_call_operand.vmem [shape: f32[9,16,1], index: 0, kind: input, shape index: {}]
  %s1 = inlined_call_operand.vmem [shape: bf16[16,128], index: 1, kind: input, shape index: {}]
  %s2 = inlined_call_operand.vmem [shape: bf16[9,1,512,128], index: 2, kind: input, shape index: {}]
  %s3 = inlined_call_operand.vmem [shape: bf16[9,1,256,128], index: 3, kind: input, shape index: {}]
  %s4 = inlined_call_operand.hbm [shape: bf16[16,128], index: 4, kind: output, shape index: {}]
  %s5 = sld [smem:[#allocation0]]
  $region57: #{_moe_impl.1} parent=0
    _
  %s7 = ssub.s32 1, %s5
  %s8 = scalar_select 0, %s7, %s5
  $region1: #{_moe_impl.1} parent=0
    #allocation3 [shape = 'u8[4096]{0}', space=vmem, size = 0x1000, scoped, tag = 'output window, operand 0, single buffered']
    #allocation4 [shape = 's32[2]{0}', space=sflag, size = 0x8, scoped, tag = 'scoped memory for _moe_impl.1']
    %9 = vsyncpa [#allocation4], 0
    loop: start=0, step=1, limit=11
    $region2: #{_moe_impl.1} parent=1 // loop_pre_header
      _
    $region3: #{_moe_impl.1} parent=1 // loop_header
      %s11 = sphi 0, %s15
      %p12 = scmp.ge.s32.totalorder %s11, 11
      %s18 = sphi 0, %s37
      %s19 = sphi 0, %s33
      %s20 = sphi 0, %s29
      %s21 = sphi 0, %s18
      %s22 = sphi 0, %s19
      %s23 = sphi 0, %s20
      %s24 = sphi 0, %s21
      %s25 = sphi 0, %s22
      %s26 = sphi 0, %s23
      %s42 = sphi 0, %s44
      %s45 = sphi 0, %s42
      %s46 = sphi 0, %s45
      %s62 = sphi 0, %s46
      %s68 = sphi 0, %s70
      %s71 = sphi 0, %s68
      %s72 = sphi 0, %s71
      %s88 = sphi 0, %s72
      %s96 = sphi 0, %s98
      %s99 = sphi 0, %s96
      %s100 = sphi 0, %s99
      %s116 = sphi 0, %s100
      %s124 = sphi 0, %s126
      %s127 = sphi 0, %s124
      %s128 = sphi 0, %s127
      %s144 = sphi 0, %s128
      %s150 = sphi 0, %s152
      %s153 = sphi 0, %s150
      %s154 = sphi 0, %s153
      %s170 = sphi 0, %s154
    $region4: #{_moe_impl.1} parent=1 // loop_header_branch
      %14 = sbr.rel (%p12) target = $region8
    $region5: #{_moe_impl.1} parent=1 // loop_body
      %s16 = ssub.s32 %s11, 1
      %s17 = ssub.s32 %s11, 2
      %s27 = sadd.s32 1, %s20
      %p28 = scmp.ge.s32.totalorder %s27, 1
      %s29 = scalar_select %p28, 0, %s27
      %s30 = sadd.s32 1, %s19
      %s31 = scalar_select %p28, %s30, %s19
      %p32 = scmp.ge.s32.totalorder %s31, 9
      %s33 = scalar_select %p32, 0, %s31
      %s34 = sadd.s32 1, %s18
      %s35 = scalar_select %p32, %s34, %s18
      %p36 = scmp.ge.s32.totalorder %s35, 1
      %s37 = scalar_select %p36, 0, %s35
      %s38 = ssub.s32 %s19, %s33
      %s39 = ssub.s32 %s18, %s37
      %s40 = sor.u32 %s38, %s39
      %p41 = scmp.eq.s32.totalorder %s40, 0
      %s43 = sadd.s32 %s42, 1
      %s44 = scalar_select %p41, %s42, %s43
      %p47 = pneg %p41
      %p48 = scmp.eq.s32.totalorder %s11, 8
      %p49 = por %p47, %p48
      %p50 = scmp.ne.s32.totalorder %s42, %s45
      %p51 = scmp.eq.s32.totalorder %s11, 0
      %p52 = por %p50, %p51
      %p53 = scmp.ne.s32.totalorder %s42, %s45
      %p54 = scmp.eq.s32.totalorder %s16, 8
      %p55 = por %p53, %p54
      %p56 = scmp.ne.s32.totalorder %s45, %s46
      %p57 = scmp.eq.s32.totalorder %s16, 0
      %p58 = por %p56, %p57
      %p59 = scmp.ne.s32.totalorder %s45, %s46
      %p60 = scmp.eq.s32.totalorder %s17, 8
      %p61 = por %p59, %p60
      %p63 = scmp.ne.s32.totalorder %s46, %s62
      %p64 = scmp.eq.s32.totalorder %s17, 0
      %p65 = por %p63, %p64
      %s66 = ssub.s32 %s18, %s37
      %p67 = scmp.eq.s32.totalorder %s66, 0
      %s69 = sadd.s32 %s68, 1
      %s70 = scalar_select %p67, %s68, %s69
      %p73 = pneg %p67
      %p74 = scmp.eq.s32.totalorder %s11, 8
      %p75 = por %p73, %p74
      %p76 = scmp.ne.s32.totalorder %s68, %s71
      %p77 = scmp.eq.s32.totalorder %s11, 0
      %p78 = por %p76, %p77
      %p79 = scmp.ne.s32.totalorder %s68, %s71
      %p80 = scmp.eq.s32.totalorder %s16, 8
      %p81 = por %p79, %p80
      %p82 = scmp.ne.s32.totalorder %s71, %s72
      %p83 = scmp.eq.s32.totalorder %s16, 0
      %p84 = por %p82, %p83
      %p85 = scmp.ne.s32.totalorder %s71, %s72
      %p86 = scmp.eq.s32.totalorder %s17, 8
      %p87 = por %p85, %p86
      %p89 = scmp.ne.s32.totalorder %s72, %s88
      %p90 = scmp.eq.s32.totalorder %s17, 0
      %p91 = por %p89, %p90
      %s92 = ssub.s32 %s19, %s33
      %s93 = ssub.s32 %s20, %s29
      %s94 = sor.u32 %s92, %s93
      %p95 = scmp.eq.s32.totalorder %s94, 0
      %s97 = sadd.s32 %s96, 1
      %s98 = scalar_select %p95, %s96, %s97
      %p101 = pneg %p95
      %p102 = scmp.eq.s32.totalorder %s11, 8
      %p103 = por %p101, %p102
      %p104 = scmp.ne.s32.totalorder %s96, %s99
      %p105 = scmp.eq.s32.totalorder %s11, 0
      %p106 = por %p104, %p105
      %p107 = scmp.ne.s32.totalorder %s96, %s99
      %p108 = scmp.eq.s32.totalorder %s16, 8
      %p109 = por %p107, %p108
      %p110 = scmp.ne.s32.totalorder %s99, %s100
      %p111 = scmp.eq.s32.totalorder %s16, 0
      %p112 = por %p110, %p111
      %p113 = scmp.ne.s32.totalorder %s99, %s100
      %p114 = scmp.eq.s32.totalorder %s17, 8
      %p115 = por %p113, %p114
      %p117 = scmp.ne.s32.totalorder %s100, %s116
      %p118 = scmp.eq.s32.totalorder %s17, 0
      %p119 = por %p117, %p118
      %s120 = ssub.s32 %s19, %s33
      %s121 = ssub.s32 %s20, %s29
      %s122 = sor.u32 %s120, %s121
      %p123 = scmp.eq.s32.totalorder %s122, 0
      %s125 = sadd.s32 %s124, 1
      %s126 = scalar_select %p123, %s124, %s125
      %p129 = pneg %p123
      %p130 = scmp.eq.s32.totalorder %s11, 8
      %p131 = por %p129, %p130
      %p132 = scmp.ne.s32.totalorder %s124, %s127
      %p133 = scmp.eq.s32.totalorder %s11, 0
      %p134 = por %p132, %p133
      %p135 = scmp.ne.s32.totalorder %s124, %s127
      %p136 = scmp.eq.s32.totalorder %s16, 8
      %p137 = por %p135, %p136
      %p138 = scmp.ne.s32.totalorder %s127, %s128
      %p139 = scmp.eq.s32.totalorder %s16, 0
      %p140 = por %p138, %p139
      %p141 = scmp.ne.s32.totalorder %s127, %s128
      %p142 = scmp.eq.s32.totalorder %s17, 8
      %p143 = por %p141, %p142
      %p145 = scmp.ne.s32.totalorder %s128, %s144
      %p146 = scmp.eq.s32.totalorder %s17, 0
      %p147 = por %p145, %p146
      %s148 = ssub.s32 %s18, %s37
      %p149 = scmp.eq.s32.totalorder %s148, 0
      %s151 = sadd.s32 %s150, 1
      %s152 = scalar_select %p149, %s150, %s151
      %p155 = pneg %p149
      %p156 = scmp.eq.s32.totalorder %s11, 8
      %p157 = por %p155, %p156
      %p158 = scmp.ne.s32.totalorder %s150, %s153
      %p159 = scmp.eq.s32.totalorder %s11, 0
      %p160 = por %p158, %p159
      %p161 = scmp.ne.s32.totalorder %s150, %s153
      %p162 = scmp.eq.s32.totalorder %s16, 8
      %p163 = por %p161, %p162
      %p164 = scmp.ne.s32.totalorder %s153, %s154
      %p165 = scmp.eq.s32.totalorder %s16, 0
      %p166 = por %p164, %p165
      %p167 = scmp.ne.s32.totalorder %s153, %s154
      %p168 = scmp.eq.s32.totalorder %s17, 8
      %p169 = por %p167, %p168
      %p171 = scmp.ne.s32.totalorder %s154, %s170
      %p172 = scmp.eq.s32.totalorder %s17, 0
      %p173 = por %p171, %p172
      %p174 = scmp.le.s32.totalorder 1, %s11
      %p175 = scmp.lt.s32.totalorder %s11, 10
      %p176 = pnand %p174, %p175
      %p177 = pneg %p176
      // Predicated region
      $region9: #{_moe_impl.1} parent=5 // pred_check
        _
      $region10: #{_moe_impl.1} parent=5 // pred_check_branch
        %179 = sbr.rel (%p176) target = $region12
      $region11: #{_moe_impl.1} parent=5 // pred_region
        %s180 = ssub.s32 %s11, 1
        // Predicated region
        $region13: #{_moe_impl.1} parent=11 // pred_check
          %p181 = pneg %p84
        $region14: #{_moe_impl.1} parent=11 // pred_check_branch
          %183 = sbr.rel (%p181) target = $region16
        $region15: #{_moe_impl.1} parent=11 // pred_region
          %s184 = smul.u32 2, %s21
          %p185 = scmp.lt.s32.totalorder %s184, 1
          %s186 = scalar_select %p185, %s184, 1
          %s187 = smul.addr %s186, 4
          %s188 = scalar_lea.vmem %s1, %s187
          %s189 = smul.u32 2, %s21
        $region16: #{_moe_impl.1} parent=11 // pred_fallthru
          _
      $region12: #{_moe_impl.1} parent=5 // pred_fallthru
        _
      %p190 = scmp.lt.s32.totalorder %s11, 9
      // Predicated region
      $region17: #{_moe_impl.1} parent=5 // pred_check
        %p191 = pneg %p190
      $region18: #{_moe_impl.1} parent=5 // pred_check_branch
        %193 = sbr.rel (%p191) target = $region20
      $region19: #{_moe_impl.1} parent=5 // pred_region
        // Predicated region
        $region21: #{_moe_impl.1} parent=19 // pred_check
          %p194 = pneg %p52
        $region22: #{_moe_impl.1} parent=19 // pred_check_branch
          %196 = sbr.rel (%p194) target = $region24
        $region23: #{_moe_impl.1} parent=19 // pred_region
          %s197 = smul.u32 2, %s18
          %p198 = scmp.lt.s32.totalorder %s19, 8
          %s199 = scalar_select %p198, %s19, 8
          %p200 = scmp.lt.s32.totalorder %s197, 1
          %s201 = scalar_select %p200, %s197, 1
          %s202 = smul.addr %s199, 2
          %s203 = sadd.s32 %s201, %s202
          %s204 = smul.addr %s203, 8
          %s205 = scalar_lea.vmem %s0, %s204
          %s206 = smul.u32 2, %s18
        $region24: #{_moe_impl.1} parent=19 // pred_fallthru
          _
        // Predicated region
        $region25: #{_moe_impl.1} parent=19 // pred_check
          %p207 = pneg %p106
        $region26: #{_moe_impl.1} parent=19 // pred_check_branch
          %209 = sbr.rel (%p207) target = $region28
        $region27: #{_moe_impl.1} parent=19 // pred_region
          %p210 = scmp.lt.s32.totalorder %s19, 8
          %s211 = scalar_select %p210, %s19, 8
          %p212 = scmp.lt.s32.totalorder %s20, 0
          %s213 = scalar_select %p212, %s20, 0
          %s214 = smul.addr %s213, 64
          %s215 = smul.addr %s211, 64
          %s216 = sadd.s32 %s214, %s215
          %s217 = smul.addr %s216, 4
          %s218 = scalar_lea.vmem %s2, %s217
        $region28: #{_moe_impl.1} parent=19 // pred_fallthru
          _
        // Predicated region
        $region29: #{_moe_impl.1} parent=19 // pred_check
          %p219 = pneg %p134
        $region30: #{_moe_impl.1} parent=19 // pred_check_branch
          %221 = sbr.rel (%p219) target = $region32
        $region31: #{_moe_impl.1} parent=19 // pred_region
          %p222 = scmp.lt.s32.totalorder %s19, 8
          %s223 = scalar_select %p222, %s19, 8
          %p224 = scmp.lt.s32.totalorder %s20, 0
          %s225 = scalar_select %p224, %s20, 0
          %s226 = smul.addr %s225, 32
          %s227 = smul.addr %s223, 32
          %s228 = sadd.s32 %s226, %s227
          %s229 = smul.addr %s228, 4
          %s230 = scalar_lea.vmem %s3, %s229
        $region32: #{_moe_impl.1} parent=19 // pred_fallthru
          _
      $region20: #{_moe_impl.1} parent=5 // pred_fallthru
        _
      %p231 = scmp.le.s32.totalorder 1, %s11
      %p232 = scmp.lt.s32.totalorder %s11, 10
      %p233 = pnand %p231, %p232
      %p234 = pneg %p233
      // Predicated region
      $region33: #{_moe_impl.1} parent=5 // pred_check
        _
      $region34: #{_moe_impl.1} parent=5 // pred_check_branch
        %236 = sbr.rel (%p233) target = $region36
      $region35: #{_moe_impl.1} parent=5 // pred_region
        %s237 = ssub.s32 %s11, 1
        %s238 = smul.u32 2, %s21
        %p239 = scmp.lt.s32.totalorder %s22, 8
        %s240 = scalar_select %p239, %s22, 8
        %p241 = scmp.lt.s32.totalorder %s238, 1
        %s242 = scalar_select %p241, %s238, 1
        %s243 = smul.addr %s240, 2
        %s244 = sadd.s32 %s242, %s243
        %s245 = smul.addr %s244, 8
        %s246 = scalar_lea.vmem %s0, %s245
        %p247 = pneg %p58
        %p248 = pneg %p55
        %s249 = smul.u32 2, %s21
        %p250 = scmp.lt.s32.totalorder %s249, 1
        %s251 = scalar_select %p250, %s249, 1
        %s252 = smul.addr %s251, 4
        %s253 = scalar_lea.vmem %s1, %s252
        %p254 = pneg %p84
        %p255 = pneg %p81
        %p256 = scmp.lt.s32.totalorder %s22, 8
        %s257 = scalar_select %p256, %s22, 8
        %p258 = scmp.lt.s32.totalorder %s23, 0
        %s259 = scalar_select %p258, %s23, 0
        %s260 = smul.addr %s259, 64
        %s261 = smul.addr %s257, 64
        %s262 = sadd.s32 %s260, %s261
        %s263 = smul.addr %s262, 4
        %s264 = scalar_lea.vmem %s2, %s263
        %p265 = pneg %p112
        %p266 = pneg %p109
        %p267 = scmp.lt.s32.totalorder %s22, 8
        %s268 = scalar_select %p267, %s22, 8
        %p269 = scmp.lt.s32.totalorder %s23, 0
        %s270 = scalar_select %p269, %s23, 0
        %s271 = smul.addr %s270, 32
        %s272 = smul.addr %s268, 32
        %s273 = sadd.s32 %s271, %s272
        %s274 = smul.addr %s273, 4
        %s275 = scalar_lea.vmem %s3, %s274
        %p276 = pneg %p140
        %p277 = pneg %p137
        %p278 = pneg %p166
        %p279 = pneg %p163
        %s280 = smul.u32 2, %s21
        %p281 = scmp.lt.s32.totalorder %s22, 8
        %s282 = scalar_select %p281, %s22, 8
        %p283 = scmp.lt.s32.totalorder %s280, 1
        %s284 = scalar_select %p283, %s280, 1
        %s285 = smul.addr %s282, 2
        %s286 = sadd.s32 %s284, %s285
        %s287 = smul.addr %s286, 8
        %s288 = scalar_lea.vmem %s0, %s287
        %s289 = smul.u32 2, %s21
        %s290 = smul.u32 2, %s21
        %p291 = scmp.lt.s32.totalorder %s290, 1
        %s292 = scalar_select %p291, %s290, 1
        %s293 = smul.addr %s292, 4
        %s294 = scalar_lea.vmem %s1, %s293
        %s295 = smul.u32 2, %s21
        %p296 = scmp.lt.s32.totalorder %s22, 8
        %s297 = scalar_select %p296, %s22, 8
        %p298 = scmp.lt.s32.totalorder %s23, 0
        %s299 = scalar_select %p298, %s23, 0
        %s300 = smul.addr %s299, 64
        %s301 = smul.addr %s297, 64
        %s302 = sadd.s32 %s300, %s301
        %s303 = smul.addr %s302, 4
        %s304 = scalar_lea.vmem %s2, %s303
        %p305 = scmp.lt.s32.totalorder %s22, 8
        %s306 = scalar_select %p305, %s22, 8
        %p307 = scmp.lt.s32.totalorder %s23, 0
        %s308 = scalar_select %p307, %s23, 0
        %s309 = smul.addr %s308, 32
        %s310 = smul.addr %s306, 32
        %s311 = sadd.s32 %s309, %s310
        %s312 = smul.addr %s311, 4
        %s313 = scalar_lea.vmem %s3, %s312
        %s314 = smul.u32 2, %s21
        %p315 = scmp.eq.s32.totalorder %s22, 0
        %p316 = scmp.eq.s32.totalorder %s23, 0
        %p317 = pnand %p315, %p316
        %p318 = pneg %p317
        // Predicated region
        $region37: #{_moe_impl.1} parent=35 // pred_check
          _
        $region38: #{_moe_impl.1} parent=35 // pred_check_branch
          %320 = sbr.rel (%p317) target = $region40
        $region39: #{_moe_impl.1} parent=35 // pred_region
          %321 = vst [vmem:[#allocation2] sm:$0xff] 0.0
          %322 = vst [vmem:[#allocation2 + $0x8] sm:$0xff] 0.0
        $region40: #{_moe_impl.1} parent=35 // pred_fallthru
          _
        %v323 = vld [vmem:[%s294] sm:$0xf]
        %v324 = vld [vmem:[%s294 + $0x4] sm:$0xf]
        %v325 = vld [vmem:[%s304] sm:$0xf]
        %v326 = vld [vmem:[%s304 + $0x4] sm:$0xf]
        %v327 = vld [vmem:[%s304 + $0x8] sm:$0xf]
        %v328 = vld [vmem:[%s304 + $0xc] sm:$0xf]
        %v329 = vld [vmem:[%s304 + $0x10] sm:$0xf]
        %v330 = vld [vmem:[%s304 + $0x14] sm:$0xf]
        %v331 = vld [vmem:[%s304 + $0x18] sm:$0xf]
        %v332 = vld [vmem:[%s304 + $0x1c] sm:$0xf]
        %v333 = vld [vmem:[%s304 + $0x20] sm:$0xf]
        %v334 = vld [vmem:[%s304 + $0x24] sm:$0xf]
        %v335 = vld [vmem:[%s304 + $0x28] sm:$0xf]
        %v336 = vld [vmem:[%s304 + $0x2c] sm:$0xf]
        %v337 = vld [vmem:[%s304 + $0x30] sm:$0xf]
        %v338 = vld [vmem:[%s304 + $0x34] sm:$0xf]
        %v339 = vld [vmem:[%s304 + $0x38] sm:$0xf]
        %v340 = vld [vmem:[%s304 + $0x3c] sm:$0xf]
        %v341 = vld [vmem:[%s304 + $0x40] sm:$0xf]
        %v342 = vld [vmem:[%s304 + $0x44] sm:$0xf]
        %v343 = vld [vmem:[%s304 + $0x48] sm:$0xf]
        %v344 = vld [vmem:[%s304 + $0x4c] sm:$0xf]
        %v345 = vld [vmem:[%s304 + $0x50] sm:$0xf]
        %v346 = vld [vmem:[%s304 + $0x54] sm:$0xf]
        %v347 = vld [vmem:[%s304 + $0x58] sm:$0xf]
        %v348 = vld [vmem:[%s304 + $0x5c] sm:$0xf]
        %v349 = vld [vmem:[%s304 + $0x60] sm:$0xf]
        %v350 = vld [vmem:[%s304 + $0x64] sm:$0xf]
        %v351 = vld [vmem:[%s304 + $0x68] sm:$0xf]
        %v352 = vld [vmem:[%s304 + $0x6c] sm:$0xf]
        %v353 = vld [vmem:[%s304 + $0x70] sm:$0xf]
        %v354 = vld [vmem:[%s304 + $0x74] sm:$0xf]
        %v355 = vld [vmem:[%s304 + $0x78] sm:$0xf]
        %v356 = vld [vmem:[%s304 + $0x7c] sm:$0xf]
        %v357 = vld [vmem:[%s304 + $0x80] sm:$0xf]
        %v358 = vld [vmem:[%s304 + $0x84] sm:$0xf]
        %v359 = vld [vmem:[%s304 + $0x88] sm:$0xf]
        %v360 = vld [vmem:[%s304 + $0x8c] sm:$0xf]
        %v361 = vld [vmem:[%s304 + $0x90] sm:$0xf]
        %v362 = vld [vmem:[%s304 + $0x94] sm:$0xf]
        %v363 = vld [vmem:[%s304 + $0x98] sm:$0xf]
        %v364 = vld [vmem:[%s304 + $0x9c] sm:$0xf]
        %v365 = vld [vmem:[%s304 + $0xa0] sm:$0xf]
        %v366 = vld [vmem:[%s304 + $0xa4] sm:$0xf]
        %v367 = vld [vmem:[%s304 + $0xa8] sm:$0xf]
        %v368 = vld [vmem:[%s304 + $0xac] sm:$0xf]
        %v369 = vld [vmem:[%s304 + $0xb0] sm:$0xf]
        %v370 = vld [vmem:[%s304 + $0xb4] sm:$0xf]
        %v371 = vld [vmem:[%s304 + $0xb8] sm:$0xf]
        %v372 = vld [vmem:[%s304 + $0xbc] sm:$0xf]
        %v373 = vld [vmem:[%s304 + $0xc0] sm:$0xf]
        %v374 = vld [vmem:[%s304 + $0xc4] sm:$0xf]
        %v375 = vld [vmem:[%s304 + $0xc8] sm:$0xf]
        %v376 = vld [vmem:[%s304 + $0xcc] sm:$0xf]
        %v377 = vld [vmem:[%s304 + $0xd0] sm:$0xf]
        %v378 = vld [vmem:[%s304 + $0xd4] sm:$0xf]
        %v379 = vld [vmem:[%s304 + $0xd8] sm:$0xf]
        %v380 = vld [vmem:[%s304 + $0xdc] sm:$0xf]
        %v381 = vld [vmem:[%s304 + $0xe0] sm:$0xf]
        %v382 = vld [vmem:[%s304 + $0xe4] sm:$0xf]
        %v383 = vld [vmem:[%s304 + $0xe8] sm:$0xf]
        %v384 = vld [vmem:[%s304 + $0xec] sm:$0xf]
        %v385 = vld [vmem:[%s304 + $0xf0] sm:$0xf]
        %v386 = vld [vmem:[%s304 + $0xf4] sm:$0xf]
        %v387 = vld [vmem:[%s304 + $0xf8] sm:$0xf]
        %v388 = vld [vmem:[%s304 + $0xfc] sm:$0xf]
        %v391 = vunpack.c.l.b16 %v323
        %v392 = vunpack.c.l.b16 %v324
        %v393 = vpack.c.b16 %v392, %v391
        %v459 = vunpack.c.l.b16 %v325
        %v460 = vunpack.c.l.b16 %v326
        %v461 = vunpack.c.l.b16 %v327
        %v462 = vunpack.c.l.b16 %v328
        %v463 = vunpack.c.l.b16 %v329
        %v464 = vunpack.c.l.b16 %v330
        %v465 = vunpack.c.l.b16 %v331
        %v466 = vunpack.c.l.b16 %v332
        %v467 = vunpack.c.l.b16 %v333
        %v468 = vunpack.c.l.b16 %v334
        %v469 = vunpack.c.l.b16 %v335
        %v470 = vunpack.c.l.b16 %v336
        %v471 = vunpack.c.l.b16 %v337
        %v472 = vunpack.c.l.b16 %v338
        %v473 = vunpack.c.l.b16 %v339
        %v474 = vunpack.c.l.b16 %v340
        %v475 = vunpack.c.l.b16 %v341
        %v476 = vunpack.c.l.b16 %v342
        %v477 = vunpack.c.l.b16 %v343
        %v478 = vunpack.c.l.b16 %v344
        %v479 = vunpack.c.l.b16 %v345
        %v480 = vunpack.c.l.b16 %v346
        %v481 = vunpack.c.l.b16 %v347
        %v482 = vunpack.c.l.b16 %v348
        %v483 = vunpack.c.l.b16 %v349
        %v484 = vunpack.c.l.b16 %v350
        %v485 = vunpack.c.l.b16 %v351
        %v486 = vunpack.c.l.b16 %v352
        %v487 = vunpack.c.l.b16 %v353
        %v488 = vunpack.c.l.b16 %v354
        %v489 = vunpack.c.l.b16 %v355
        %v490 = vunpack.c.l.b16 %v356
        %v491 = vunpack.c.l.b16 %v357
        %v492 = vunpack.c.l.b16 %v358
        %v493 = vunpack.c.l.b16 %v359
        %v494 = vunpack.c.l.b16 %v360
        %v495 = vunpack.c.l.b16 %v361
        %v496 = vunpack.c.l.b16 %v362
        %v497 = vunpack.c.l.b16 %v363
        %v498 = vunpack.c.l.b16 %v364
        %v499 = vunpack.c.l.b16 %v365
        %v500 = vunpack.c.l.b16 %v366
        %v501 = vunpack.c.l.b16 %v367
        %v502 = vunpack.c.l.b16 %v368
        %v503 = vunpack.c.l.b16 %v369
        %v504 = vunpack.c.l.b16 %v370
        %v505 = vunpack.c.l.b16 %v371
        %v506 = vunpack.c.l.b16 %v372
        %v507 = vunpack.c.l.b16 %v373
        %v508 = vunpack.c.l.b16 %v374
        %v509 = vunpack.c.l.b16 %v375
        %v510 = vunpack.c.l.b16 %v376
        %v511 = vunpack.c.l.b16 %v377
        %v512 = vunpack.c.l.b16 %v378
        %v513 = vunpack.c.l.b16 %v379
        %v514 = vunpack.c.l.b16 %v380
        %v515 = vunpack.c.l.b16 %v381
        %v516 = vunpack.c.l.b16 %v382
        %v517 = vunpack.c.l.b16 %v383
        %v518 = vunpack.c.l.b16 %v384
        %v519 = vunpack.c.l.b16 %v385
        %v520 = vunpack.c.l.b16 %v386
        %v521 = vunpack.c.l.b16 %v387
        %v522 = vunpack.c.l.b16 %v388
        %v523 = vpack.c.b16 %v460, %v459
        %v524 = vpack.c.b16 %v462, %v461
        %v525 = vpack.c.b16 %v464, %v463
        %v526 = vpack.c.b16 %v466, %v465
        %v527 = vpack.c.b16 %v468, %v467
        %v528 = vpack.c.b16 %v470, %v469
        %v529 = vpack.c.b16 %v472, %v471
        %v530 = vpack.c.b16 %v474, %v473
        %v531 = vpack.c.b16 %v476, %v475
        %v532 = vpack.c.b16 %v478, %v477
        %v533 = vpack.c.b16 %v480, %v479
        %v534 = vpack.c.b16 %v482, %v481
        %v535 = vpack.c.b16 %v484, %v483
        %v536 = vpack.c.b16 %v486, %v485
        %v537 = vpack.c.b16 %v488, %v487
        %v538 = vpack.c.b16 %v490, %v489
        %v539 = vpack.c.b16 %v492, %v491
        %v540 = vpack.c.b16 %v494, %v493
        %v541 = vpack.c.b16 %v496, %v495
        %v542 = vpack.c.b16 %v498, %v497
        %v543 = vpack.c.b16 %v500, %v499
        %v544 = vpack.c.b16 %v502, %v501
        %v545 = vpack.c.b16 %v504, %v503
        %v546 = vpack.c.b16 %v506, %v505
        %v547 = vpack.c.b16 %v508, %v507
        %v548 = vpack.c.b16 %v510, %v509
        %v549 = vpack.c.b16 %v512, %v511
        %v550 = vpack.c.b16 %v514, %v513
        %v551 = vpack.c.b16 %v516, %v515
        %v552 = vpack.c.b16 %v518, %v517
        %v553 = vpack.c.b16 %v520, %v519
        %v554 = vpack.c.b16 %v522, %v521
        %587 = vmatpush.bf16.xpose.msra.mxu0 %v530
        %588 = vmatpush.bf16.xpose.msra.mxu0 %v529
        %589 = vmatpush.bf16.xpose.msra.mxu0 %v528
        %590 = vmatpush.bf16.xpose.msra.mxu0 %v527
        %591 = vmatpush.bf16.xpose.msra.mxu0 %v526
        %592 = vmatpush.bf16.xpose.msra.mxu0 %v525
        %593 = vmatpush.bf16.xpose.msra.mxu0 %v524
        %594 = vmatpush.bf16.xpose.msra.mxu0 %v523
        %595 = vmatmul.bf16.gmra.mxu0 %v393
        %v596 = vpop.f32.mrf.mxu0
        %v597 = vadd.f32 0.0, %v596
        %v598 = vpop.f32.mrf.mxu0
        %v599 = vadd.f32 0.0, %v598
        %600 = vdwg.mxu0
        %601 = vmatpush.bf16.xpose.msra.mxu0 %v538
        %602 = vmatpush.bf16.xpose.msra.mxu0 %v537
        %603 = vmatpush.bf16.xpose.msra.mxu0 %v536
        %604 = vmatpush.bf16.xpose.msra.mxu0 %v535
        %605 = vmatpush.bf16.xpose.msra.mxu0 %v534
        %606 = vmatpush.bf16.xpose.msra.mxu0 %v533
        %607 = vmatpush.bf16.xpose.msra.mxu0 %v532
        %608 = vmatpush.bf16.xpose.msra.mxu0 %v531
        %609 = vmatmul.bf16.gmra.mxu0 %v393
        %v610 = vpop.f32.mrf.mxu0
        %v611 = vadd.f32 0.0, %v610
        %v612 = vpop.f32.mrf.mxu0
        %v613 = vadd.f32 0.0, %v612
        %614 = vdwg.mxu0
        %615 = vmatpush.bf16.xpose.msra.mxu0 %v546
        %616 = vmatpush.bf16.xpose.msra.mxu0 %v545
        %617 = vmatpush.bf16.xpose.msra.mxu0 %v544
        %618 = vmatpush.bf16.xpose.msra.mxu0 %v543
        %619 = vmatpush.bf16.xpose.msra.mxu0 %v542
        %620 = vmatpush.bf16.xpose.msra.mxu0 %v541
        %621 = vmatpush.bf16.xpose.msra.mxu0 %v540
        %622 = vmatpush.bf16.xpose.msra.mxu0 %v539
        %623 = vmatmul.bf16.gmra.mxu0 %v393
        %v624 = vpop.f32.mrf.mxu0
        %v625 = vadd.f32 0.0, %v624
        %v626 = vpop.f32.mrf.mxu0
        %v627 = vadd.f32 0.0, %v626
        %628 = vdwg.mxu0
        %629 = vmatpush.bf16.xpose.msra.mxu0 %v554
        %630 = vmatpush.bf16.xpose.msra.mxu0 %v553
        %631 = vmatpush.bf16.xpose.msra.mxu0 %v552
        %632 = vmatpush.bf16.xpose.msra.mxu0 %v551
        %633 = vmatpush.bf16.xpose.msra.mxu0 %v550
        %634 = vmatpush.bf16.xpose.msra.mxu0 %v549
        %635 = vmatpush.bf16.xpose.msra.mxu0 %v548
        %636 = vmatpush.bf16.xpose.msra.mxu0 %v547
        %637 = vmatmul.bf16.gmra.mxu0 %v393
        %v638 = vpop.f32.mrf.mxu0
        %v639 = vadd.f32 0.0, %v638
        %v640 = vpop.f32.mrf.mxu0
        %v641 = vadd.f32 0.0, %v640
        %642 = vdwg.mxu0
        %v643 = vxor.u32 %v597, 2147483648
        %v644 = vxor.u32 %v611, 2147483648
        %v645 = vxor.u32 %v599, 2147483648
        %v646 = vxor.u32 %v613, 2147483648
        %v647 = vmul.f32 %v643, 1.442695
        %v648 = vpow.pop %v647
        %v649 = vmul.f32 %v644, 1.442695
        %v650 = vpow.pop %v649
        %v651 = vmul.f32 %v645, 1.442695
        %v652 = vpow.pop %v651
        %v653 = vmul.f32 %v646, 1.442695
        %v654 = vpow.pop %v653
        %v655 = vadd.f32 %v648, 1.0
        %v656 = vadd.f32 %v650, 1.0
        %v657 = vadd.f32 %v652, 1.0
        %v658 = vadd.f32 %v654, 1.0
        %v659 = vrcp.pop %v655
        %v660 = vmul.f32 %v655, %v659
        %v661 = vsub.f32 1.0, %v660
        %v662 = vmul.f32 %v659, %v661
        %v663 = vadd.f32 %v659, %v662
        %vm664 = vweird.f32 %v655
        %vm665 = vweird.f32 %v659
        %vm666 = vmor %vm664, %vm665
        %v667 = vsel %vm666, %v659, %v663
        %v668 = vand.u32 2147483647, %v655
        %vm669 = vcmp.eq.f32.partialorder %v668, 8.507059e+37
        %v670 = vand.u32 %v655, 2147483648
        %v671 = vor.u32 1.1754944e-38, %v670
        %v672 = vsel %vm669, %v671, %v667
        %v673 = vmul.f32 1.0, %v672
        %v674 = vrcp.pop %v656
        %v675 = vmul.f32 %v656, %v674
        %v676 = vsub.f32 1.0, %v675
        %v677 = vmul.f32 %v674, %v676
        %v678 = vadd.f32 %v674, %v677
        %vm679 = vweird.f32 %v656
        %vm680 = vweird.f32 %v674
        %vm681 = vmor %vm679, %vm680
        %v682 = vsel %vm681, %v674, %v678
        %v683 = vand.u32 2147483647, %v656
        %vm684 = vcmp.eq.f32.partialorder %v683, 8.507059e+37
        %v685 = vand.u32 %v656, 2147483648
        %v686 = vor.u32 1.1754944e-38, %v685
        %v687 = vsel %vm684, %v686, %v682
        %v688 = vmul.f32 1.0, %v687
        %v689 = vrcp.pop %v657
        %v690 = vmul.f32 %v657, %v689
        %v691 = vsub.f32 1.0, %v690
        %v692 = vmul.f32 %v689, %v691
        %v693 = vadd.f32 %v689, %v692
        %vm694 = vweird.f32 %v657
        %vm695 = vweird.f32 %v689
        %vm696 = vmor %vm694, %vm695
        %v697 = vsel %vm696, %v689, %v693
        %v698 = vand.u32 2147483647, %v657
        %vm699 = vcmp.eq.f32.partialorder %v698, 8.507059e+37
        %v700 = vand.u32 %v657, 2147483648
        %v701 = vor.u32 1.1754944e-38, %v700
        %v702 = vsel %vm699, %v701, %v697
        %v703 = vmul.f32 1.0, %v702
        %v704 = vrcp.pop %v658
        %v705 = vmul.f32 %v658, %v704
        %v706 = vsub.f32 1.0, %v705
        %v707 = vmul.f32 %v704, %v706
        %v708 = vadd.f32 %v704, %v707
        %vm709 = vweird.f32 %v658
        %vm710 = vweird.f32 %v704
        %vm711 = vmor %vm709, %vm710
        %v712 = vsel %vm711, %v704, %v708
        %v713 = vand.u32 2147483647, %v658
        %vm714 = vcmp.eq.f32.partialorder %v713, 8.507059e+37
        %v715 = vand.u32 %v658, 2147483648
        %v716 = vor.u32 1.1754944e-38, %v715
        %v717 = vsel %vm714, %v716, %v712
        %v718 = vmul.f32 1.0, %v717
        %v719 = vmul.f32 %v597, %v673
        %v720 = vmul.f32 %v611, %v688
        %v721 = vmul.f32 %v599, %v703
        %v722 = vmul.f32 %v613, %v718
        %v723 = vmul.f32 %v719, %v625
        %v724 = vmul.f32 %v720, %v639
        %v725 = vmul.f32 %v721, %v627
        %v726 = vmul.f32 %v722, %v641
        %v727 = vld [vmem:[%s288] sm:$0xff]
        %v728 = vld [vmem:[%s288 + $0x8] sm:$0xff]
        %730 = vset.pattern.permute.xlu0 0
        %731 = vperm.xlu0 %730, %v727
        %v732 = vpop.permute.xlu0 %731
        %735 = vset.pattern.permute.xlu0 0
        %736 = vperm.xlu0 %735, %v728
        %v737 = vpop.permute.xlu0 %736
        %v739 = vmul.f32 %v723, %v732
        %v740 = vmul.f32 %v724, %v732
        %v741 = vmul.f32 %v725, %v737
        %v742 = vmul.f32 %v726, %v737
        %v743 = vld [vmem:[#allocation2] sm:$0xff]
        %v744 = vld [vmem:[#allocation2 + $0x8] sm:$0xff]
        %v745 = vpack.c.bf16 %v741, %v739
        %v746 = vpack.c.bf16 %v742, %v740
        %v747 = vld [vmem:[%s313] sm:$0xf]
        %v748 = vld [vmem:[%s313 + $0x4] sm:$0xf]
        %v749 = vld [vmem:[%s313 + $0x8] sm:$0xf]
        %v750 = vld [vmem:[%s313 + $0xc] sm:$0xf]
        %v751 = vld [vmem:[%s313 + $0x10] sm:$0xf]
        %v752 = vld [vmem:[%s313 + $0x14] sm:$0xf]
        %v753 = vld [vmem:[%s313 + $0x18] sm:$0xf]
        %v754 = vld [vmem:[%s313 + $0x1c] sm:$0xf]
        %v755 = vld [vmem:[%s313 + $0x20] sm:$0xf]
        %v756 = vld [vmem:[%s313 + $0x24] sm:$0xf]
        %v757 = vld [vmem:[%s313 + $0x28] sm:$0xf]
        %v758 = vld [vmem:[%s313 + $0x2c] sm:$0xf]
        %v759 = vld [vmem:[%s313 + $0x30] sm:$0xf]
        %v760 = vld [vmem:[%s313 + $0x34] sm:$0xf]
        %v761 = vld [vmem:[%s313 + $0x38] sm:$0xf]
        %v762 = vld [vmem:[%s313 + $0x3c] sm:$0xf]
        %v763 = vld [vmem:[%s313 + $0x40] sm:$0xf]
        %v764 = vld [vmem:[%s313 + $0x44] sm:$0xf]
        %v765 = vld [vmem:[%s313 + $0x48] sm:$0xf]
        %v766 = vld [vmem:[%s313 + $0x4c] sm:$0xf]
        %v767 = vld [vmem:[%s313 + $0x50] sm:$0xf]
        %v768 = vld [vmem:[%s313 + $0x54] sm:$0xf]
        %v769 = vld [vmem:[%s313 + $0x58] sm:$0xf]
        %v770 = vld [vmem:[%s313 + $0x5c] sm:$0xf]
        %v771 = vld [vmem:[%s313 + $0x60] sm:$0xf]
        %v772 = vld [vmem:[%s313 + $0x64] sm:$0xf]
        %v773 = vld [vmem:[%s313 + $0x68] sm:$0xf]
        %v774 = vld [vmem:[%s313 + $0x6c] sm:$0xf]
        %v775 = vld [vmem:[%s313 + $0x70] sm:$0xf]
        %v776 = vld [vmem:[%s313 + $0x74] sm:$0xf]
        %v777 = vld [vmem:[%s313 + $0x78] sm:$0xf]
        %v778 = vld [vmem:[%s313 + $0x7c] sm:$0xf]
        %v811 = vunpack.c.l.b16 %v747
        %v812 = vunpack.c.l.b16 %v748
        %v813 = vunpack.c.l.b16 %v749
        %v814 = vunpack.c.l.b16 %v750
        %v815 = vunpack.c.l.b16 %v751
        %v816 = vunpack.c.l.b16 %v752
        %v817 = vunpack.c.l.b16 %v753
        %v818 = vunpack.c.l.b16 %v754
        %v819 = vunpack.c.l.b16 %v755
        %v820 = vunpack.c.l.b16 %v756
        %v821 = vunpack.c.l.b16 %v757
        %v822 = vunpack.c.l.b16 %v758
        %v823 = vunpack.c.l.b16 %v759
        %v824 = vunpack.c.l.b16 %v760
        %v825 = vunpack.c.l.b16 %v761
        %v826 = vunpack.c.l.b16 %v762
        %v827 = vunpack.c.l.b16 %v763
        %v828 = vunpack.c.l.b16 %v764
        %v829 = vunpack.c.l.b16 %v765
        %v830 = vunpack.c.l.b16 %v766
        %v831 = vunpack.c.l.b16 %v767
        %v832 = vunpack.c.l.b16 %v768
        %v833 = vunpack.c.l.b16 %v769
        %v834 = vunpack.c.l.b16 %v770
        %v835 = vunpack.c.l.b16 %v771
        %v836 = vunpack.c.l.b16 %v772
        %v837 = vunpack.c.l.b16 %v773
        %v838 = vunpack.c.l.b16 %v774
        %v839 = vunpack.c.l.b16 %v775
        %v840 = vunpack.c.l.b16 %v776
        %v841 = vunpack.c.l.b16 %v777
        %v842 = vunpack.c.l.b16 %v778
        %v843 = vpack.c.b16 %v812, %v811
        %v844 = vpack.c.b16 %v814, %v813
        %v845 = vpack.c.b16 %v816, %v815
        %v846 = vpack.c.b16 %v818, %v817
        %v847 = vpack.c.b16 %v820, %v819
        %v848 = vpack.c.b16 %v822, %v821
        %v849 = vpack.c.b16 %v824, %v823
        %v850 = vpack.c.b16 %v826, %v825
        %v851 = vpack.c.b16 %v828, %v827
        %v852 = vpack.c.b16 %v830, %v829
        %v853 = vpack.c.b16 %v832, %v831
        %v854 = vpack.c.b16 %v834, %v833
        %v855 = vpack.c.b16 %v836, %v835
        %v856 = vpack.c.b16 %v838, %v837
        %v857 = vpack.c.b16 %v840, %v839
        %v858 = vpack.c.b16 %v842, %v841
        %875 = vmatpush.bf16.msra.mxu0 %v850
        %876 = vmatpush.bf16.msra.mxu0 %v849
        %877 = vmatpush.bf16.msra.mxu0 %v848
        %878 = vmatpush.bf16.msra.mxu0 %v847
        %879 = vmatpush.bf16.msra.mxu0 %v846
        %880 = vmatpush.bf16.msra.mxu0 %v845
        %881 = vmatpush.bf16.msra.mxu0 %v844
        %882 = vmatpush.bf16.msra.mxu0 %v843
        %883 = vmatmul.bf16.gmra.mxu0 %v745
        %v884 = vpop.f32.mrf.mxu0
        %v885 = vadd.f32 0.0, %v884
        %v886 = vpop.f32.mrf.mxu0
        %v887 = vadd.f32 0.0, %v886
        %888 = vdwg.mxu0
        %889 = vmatpush.bf16.msra.mxu0 %v858
        %890 = vmatpush.bf16.msra.mxu0 %v857
        %891 = vmatpush.bf16.msra.mxu0 %v856
        %892 = vmatpush.bf16.msra.mxu0 %v855
        %893 = vmatpush.bf16.msra.mxu0 %v854
        %894 = vmatpush.bf16.msra.mxu0 %v853
        %895 = vmatpush.bf16.msra.mxu0 %v852
        %896 = vmatpush.bf16.msra.mxu0 %v851
        %897 = vmatmul.bf16.gmra.mxu0 %v746
        %v898 = vpop.f32.mrf.mxu0
        %v899 = vadd.f32 %v885, %v898
        %v900 = vpop.f32.mrf.mxu0
        %v901 = vadd.f32 %v887, %v900
        %902 = vdwg.mxu0
        %v903 = vadd.f32 %v743, %v899
        %v904 = vadd.f32 %v744, %v901
        %905 = vst [vmem:[#allocation2] sm:$0xff] %v903
        %906 = vst [vmem:[#allocation2 + $0x8] sm:$0xff] %v904
        %p907 = scmp.eq.s32.totalorder %s22, 8
        %p908 = pnand %p907, %p316
        %p909 = pneg %p908
        // Predicated region
        $region41: #{_moe_impl.1} parent=35 // pred_check
          _
        $region42: #{_moe_impl.1} parent=35 // pred_check_branch
          %911 = sbr.rel (%p908) target = $region44
        $region43: #{_moe_impl.1} parent=35 // pred_region
          %v912 = vld [vmem:[#allocation2] sm:$0xff]
          %v913 = vld [vmem:[#allocation2 + $0x8] sm:$0xff]
          %v914 = vpack.c.bf16 %v912, %v912
          %v915 = vpack.c.bf16 %v913, %v913
          %916 = vst [vmem:[#allocation3] sm:$0xf] %v914
          %917 = vst [vmem:[#allocation3 + $0x4] sm:$0xf] %v915
        $region44: #{_moe_impl.1} parent=35 // pred_fallthru
          _
        // Predicated region
        $region45: #{_moe_impl.1} parent=35 // pred_check
          %p918 = pneg %p163
        $region46: #{_moe_impl.1} parent=35 // pred_check_branch
          %920 = sbr.rel (%p918) target = $region48
        $region47: #{_moe_impl.1} parent=35 // pred_region
          %s921 = smul.u32 2, %s21
          %923 = vsyncadd [#allocation4], 0
          %s924 = smul.addr %s921, 4
          %s925 = scalar_lea.hbm %s4, %s924
          %s926 = sshll.u32 [#allocation3], 4
          %s927 = int_to_ptr.vmem [resolvable:$true] %s926
          %s928 = sshll.u32 %s925, 4
          %s929 = int_to_ptr.hbm [resolvable:$true] %s928
          %934 = dma.vmem_to_hbm [thread:$0]  %s927, 128, %s929, [#allocation4], 64, 64, 4
        $region48: #{_moe_impl.1} parent=35 // pred_fallthru
          _
        // Predicated region
        $region49: #{_moe_impl.1} parent=35 // pred_check
          %p935 = pneg %p163
        $region50: #{_moe_impl.1} parent=35 // pred_check_branch
          %937 = sbr.rel (%p935) target = $region52
        $region51: #{_moe_impl.1} parent=35 // pred_region
          %939 = dma.done [#allocation4], 128
        $region52: #{_moe_impl.1} parent=35 // pred_fallthru
          _
      $region36: #{_moe_impl.1} parent=5 // pred_fallthru
        _
      %p940 = scmp.le.s32.totalorder 2, %s11
      // Predicated region
      $region53: #{_moe_impl.1} parent=5 // pred_check
        %p941 = pneg %p940
      $region54: #{_moe_impl.1} parent=5 // pred_check_branch
        %943 = sbr.rel (%p941) target = $region56
      $region55: #{_moe_impl.1} parent=5 // pred_region
        %s944 = ssub.s32 %s11, 2
      $region56: #{_moe_impl.1} parent=5 // pred_fallthru
        _
    $region6: #{_moe_impl.1} parent=1 // loop_footer
      %s15 = sadd.s32 1, %s11
    $region7: #{_moe_impl.1} parent=1 // loop_footer_branch
      %10 = sbr.rel target = $region3
    $region8: #{_moe_impl.1} parent=1 // loop_exit
      _
    %945 = vsyncpa [#allocation4], 1
    %s946 = scalar_lea.sflag [#allocation4], 1
    %947 = vsyncpa %s946, 1

</llo_original>
